<compile_context>
chip_gen: v5e
topology: v5e:2x2
jax: 0.10.0
libtpu: 0.0.40
codegen_flags: <defaults>
</compile_context>

<pallas_src>
import jax
import jax.numpy as jnp
from jax.experimental import pallas as pl
from jax.experimental.pallas import tpu as pltpu


def _round_up(x, m):
    return ((x + m - 1) // m) * m


# --------------------------------------------------------------------------
# Kernels
# --------------------------------------------------------------------------
def _mlp_resident_kernel(x_ref, w1_ref, b1_ref, w2_ref, b2_ref, o_ref):
    """relu(x @ w1 + b1) @ w2 + b2 for one batch tile; all weights resident."""
    x = x_ref[...].astype(jnp.bfloat16)                       # in-kernel cast
    h = jnp.dot(x, w1_ref[...], preferred_element_type=jnp.float32)
    h = jnp.maximum(h + b1_ref[...], 0.0)                     # f32 bias + ReLU
    o = jnp.dot(h.astype(jnp.bfloat16), w2_ref[...],
                preferred_element_type=jnp.float32)
    o_ref[...] = (o + b2_ref[...]).astype(o_ref.dtype)


def _mlp_ktiled_kernel(x_ref, w1_ref, b1_ref, w2_ref, b2_ref, o_ref, h_acc):
    """Fallback for very large in_features: K-tiled first matmul."""
    k = pl.program_id(1)

    @pl.when(k == 0)
    def _():
        h_acc[...] = jnp.zeros_like(h_acc)

    h_acc[...] += jnp.dot(x_ref[...].astype(jnp.bfloat16), w1_ref[...],
                          preferred_element_type=jnp.float32)

    @pl.when(k == pl.num_programs(1) - 1)
    def _():
        h = jnp.maximum(h_acc[...] + b1_ref[...], 0.0)
        o = jnp.dot(h.astype(jnp.bfloat16), w2_ref[...],
                    preferred_element_type=jnp.float32)
        o_ref[...] = (o + b2_ref[...]).astype(o_ref.dtype)


# --------------------------------------------------------------------------
# Parameter preparation (done ONCE, not per forward)
# --------------------------------------------------------------------------
def prepare_params(w1, b1, w2, b2):
    """Cast weights to bf16 and pad to TPU-friendly shapes, once."""
    in_features, hidden = w1.shape
    out_features = w2.shape[1]
    assert hidden % 128 == 0
    K_pad = _round_up(in_features, 128)
    N_pad = _round_up(out_features, 128)

    w1_p = jnp.pad(w1.astype(jnp.bfloat16), ((0, K_pad - in_features), (0, 0)))
    w2_p = jnp.pad(w2.astype(jnp.bfloat16), ((0, 0), (0, N_pad - out_features)))
    b1_p = b1.reshape(1, hidden).astype(jnp.float32)
    b2_p = jnp.pad(b2.reshape(1, out_features).astype(jnp.float32),
                   ((0, 0), (0, N_pad - out_features)))
    return {
        "w1": w1_p, "b1": b1_p, "w2": w2_p, "b2": b2_p,
        "in_features": in_features, "hidden": hidden,
        "out_features": out_features, "K_pad": K_pad, "N_pad": N_pad,
    }


# --------------------------------------------------------------------------
# Forward wrapper
# --------------------------------------------------------------------------
def grid_predictor_forward(x, params, num_classes, *, tm=256, tk=512):
    """x: (B, ...) flattened to (B, in_features). params from prepare_params."""
    B = x.shape[0]
    x2d = x.reshape(B, -1).astype(jnp.float32)

    in_features = params["in_features"]
    hidden = params["hidden"]
    out_features = params["out_features"]
    K_pad = params["K_pad"]
    N_pad = params["N_pad"]
    assert x2d.shape[1] == in_features
    assert out_features == 6 * 10 * num_classes

    w1_p, b1_p, w2_p, b2_p = (params["w1"], params["b1"],
                              params["w2"], params["b2"])

    # Batch tiling: aim for >= 2 tiles once B is non-trivial so the "parallel"
    # batch axis shards across v7x's two TensorCores; tiles stay >= 8 rows.
    B8 = _round_up(B, 8)
    if B8 <= 16:
        tm_eff = B8
    else:
        tm_eff = max(16, min(tm, _round_up((B8 + 1) // 2, 16)))
    B_pad = _round_up(B8, tm_eff)
    n_bt = B_pad // tm_eff

    # Pad x only if needed (f32; cast to bf16 happens inside the kernel).
    if (B_pad, K_pad) != x2d.shape:
        x_p = jnp.pad(x2d, ((0, B_pad - B), (0, K_pad - in_features)))
    else:
        x_p = x2d

    # w1 resident whenever its bf16 footprint fits comfortably in VMEM
    # (<= 8 MiB ~ 16K input features; safe even under v7x's 32 MiB scoped
    # default with double-buffering headroom).
    use_resident_w1 = (K_pad * hidden * 2) <= 8 * 1024 * 1024

    if use_resident_w1:
        flops = 2 * B_pad * (K_pad * hidden + hidden * N_pad)
        bytes_accessed = (x_p.size * 4 + w1_p.size * 2 + w2_p.size * 2
                          + b1_p.size * 4 + b2_p.size * 4 + B_pad * N_pad * 4)
        out = pl.pallas_call(
            _mlp_resident_kernel,
            out_shape=jax.ShapeDtypeStruct((B_pad, N_pad), jnp.float32),
            grid=(n_bt,),
            in_specs=[
                pl.BlockSpec((tm_eff, K_pad), lambda i: (i, 0)),   # x tile (f32)
                pl.BlockSpec((K_pad, hidden), lambda i: (0, 0)),   # w1 resident
                pl.BlockSpec((1, hidden), lambda i: (0, 0)),       # b1 resident
                pl.BlockSpec((hidden, N_pad), lambda i: (0, 0)),   # w2 resident
                pl.BlockSpec((1, N_pad), lambda i: (0, 0)),        # b2 resident
            ],
            out_specs=pl.BlockSpec((tm_eff, N_pad), lambda i: (i, 0)),
            compiler_params=pltpu.CompilerParams(
                dimension_semantics=("parallel",)),
            cost_estimate=pl.CostEstimate(
                flops=flops, transcendentals=0, bytes_accessed=bytes_accessed),
        )(x_p, w1_p, b1_p, w2_p, b2_p)
    else:
        # K-tiled fallback: tk_eff is a divisor of K_pad (multiple of 128) so
        # no extra K padding / wasted HBM bytes are created.
        m = K_pad // 128
        n_kt = max(1, (K_pad + tk - 1) // tk)
        while m % n_kt != 0:
            n_kt += 1
        tk_eff = K_pad // n_kt

        flops = 2 * B_pad * (K_pad * hidden + hidden * N_pad)
        bytes_accessed = (x_p.size * 4 + n_bt * w1_p.size * 2 + w2_p.size * 2
                          + b1_p.size * 4 + b2_p.size * 4 + B_pad * N_pad * 4)
        out = pl.pallas_call(
            _mlp_ktiled_kernel,
            out_shape=jax.ShapeDtypeStruct((B_pad, N_pad), jnp.float32),
            grid=(n_bt, n_kt),
            in_specs=[
                pl.BlockSpec((tm_eff, tk_eff), lambda i, k: (i, k)),   # x tile
                pl.BlockSpec((tk_eff, hidden), lambda i, k: (k, 0)),   # w1 tile
                pl.BlockSpec((1, hidden), lambda i, k: (0, 0)),        # b1
                pl.BlockSpec((hidden, N_pad), lambda i, k: (0, 0)),    # w2
                pl.BlockSpec((1, N_pad), lambda i, k: (0, 0)),         # b2
            ],
            out_specs=pl.BlockSpec((tm_eff, N_pad), lambda i, k: (i, 0)),
            scratch_shapes=[pltpu.VMEM((tm_eff, hidden), jnp.float32)],
            compiler_params=pltpu.CompilerParams(
                dimension_semantics=("parallel", "arbitrary")),
            cost_estimate=pl.CostEstimate(
                flops=flops, transcendentals=0, bytes_accessed=bytes_accessed),
        )(x_p, w1_p, b1_p, w2_p, b2_p)

    # Glue: drop padding, then view(-1, 10, 6, num_classes).
    out = out[:B, :out_features]
    return out.reshape(-1, 10, 6, num_classes)


# --------------------------------------------------------------------------
# Pure-JAX reference (same bf16-operand / f32-accum numerics)
# --------------------------------------------------------------------------
def _reference_forward_bf16(x, w1, b1, w2, b2, num_classes):
    B = x.shape[0]
    x2d = x.reshape(B, -1).astype(jnp.bfloat16)
    h = jnp.dot(x2d, w1.astype(jnp.bfloat16),
                preferred_element_type=jnp.float32)
    h = jnp.maximum(h + b1.reshape(1, -1).astype(jnp.float32), 0.0)
    o = jnp.dot(h.astype(jnp.bfloat16), w2.astype(jnp.bfloat16),
                preferred_element_type=jnp.float32)
    o = o + b2.reshape(1, -1).astype(jnp.float32)
    return o.reshape(-1, 10, 6, num_classes)


if __name__ == "__main__":
    # Small, forward-consistent shapes:
    #   batch=2, input (4, 16, 16) -> in_features=1024
    #   hidden=256 (fixed by the module), num_classes=4 -> out_features=240
    key = jax.random.PRNGKey(0)
    k_x, k_w1, k_b1, k_w2, k_b2 = jax.random.split(key, 5)

    B = 2
    num_classes = 4
    in_features = 4 * 16 * 16
    hidden = 256
    out_features = 6 * 10 * num_classes

    x = jax.random.normal(k_x, (B, 4, 16, 16), dtype=jnp.float32)
    # torch stores Linear.weight as (out, in); we generate the transposed
    # (in, out) layout directly.
    w1 = jax.random.normal(k_w1, (in_features, hidden), dtype=jnp.float32) * 0.02
    b1 = jax.random.normal(k_b1, (hidden,), dtype=jnp.float32) * 0.02
    w2 = jax.random.normal(k_w2, (hidden, out_features), dtype=jnp.float32) * 0.02
    b2 = jax.random.normal(k_b2, (out_features,), dtype=jnp.float32) * 0.02

    # Parameter prep (cast + pad) happens once, outside the per-call path.
    params = prepare_params(w1, b1, w2, b2)
    params = jax.tree_util.tree_map(
        lambda a: jax.block_until_ready(a) if isinstance(a, jax.Array) else a,
        params)

    out = grid_predictor_forward(x, params, num_classes)
    out = jax.block_until_ready(out)

    ref = _reference_forward_bf16(x, w1, b1, w2, b2, num_classes)
    assert out.shape == (B, 10, 6, num_classes), out.shape
    assert jnp.allclose(out, ref, atol=1e-2, rtol=1e-2), "mismatch vs reference"

    print("KERNEL_OK")
</pallas_src>

<mosaic_0001>
module attributes {stable_mosaic.version = 11 : i64} {
  func.func @_mlp_resident_kernel(%arg0: i32, %arg1: memref<8x1024xf32, #tpu.memory_space<vmem>>, %arg2: memref<1024x256xbf16, #tpu.memory_space<vmem>>, %arg3: memref<1x256xf32, #tpu.memory_space<vmem>>, %arg4: memref<256x256xbf16, #tpu.memory_space<vmem>>, %arg5: memref<1x256xf32, #tpu.memory_space<vmem>>, %arg6: memref<8x256xf32, #tpu.memory_space<vmem>>) attributes {dimension_semantics = [#tpu.dimension_semantics<parallel>], iteration_bounds = array<i64: 1>, scalar_prefetch = 0 : i64, scratch_operands = 0 : i64, tpu.core_type = #tpu.core_type<tc>, window_params = [{transform_indices = @transform_0, window_bounds = array<i64: 8, 1024>}, {pipeline_mode = #tpu.pipeline_mode<synchronous>, transform_indices = @transform_1, window_bounds = array<i64: 1024, 256>}, {pipeline_mode = #tpu.pipeline_mode<synchronous>, transform_indices = @transform_2, window_bounds = array<i64: 1, 256>}, {pipeline_mode = #tpu.pipeline_mode<synchronous>, transform_indices = @transform_3, window_bounds = array<i64: 256, 256>}, {pipeline_mode = #tpu.pipeline_mode<synchronous>, transform_indices = @transform_4, window_bounds = array<i64: 1, 256>}, {transform_indices = @transform_5, window_bounds = array<i64: 8, 256>}]} {
    %c0 = arith.constant 0 : index
    %c0_0 = arith.constant 0 : index
    %0 = vector.load %arg1[%c0, %c0_0] : memref<8x1024xf32, #tpu.memory_space<vmem>>, vector<8x1024xf32>
    %1 = arith.truncf %0 : vector<8x1024xf32> to vector<8x1024xbf16>
    %c0_1 = arith.constant 0 : index
    %c0_2 = arith.constant 0 : index
    %2 = vector.load %arg2[%c0_1, %c0_2] : memref<1024x256xbf16, #tpu.memory_space<vmem>>, vector<1024x256xbf16>
    %cst = arith.constant dense<0.000000e+00> : vector<8x256xf32>
    %3 = tpu.matmul %1, %2, %cst {dimension_numbers = #tpu.dot_dimension_numbers<[1], [0], [0], [1], [0, 0, 1, 1], [], []>} : vector<8x1024xbf16>, vector<1024x256xbf16>, vector<8x256xf32> -> vector<8x256xf32>
    %c0_3 = arith.constant 0 : index
    %c0_4 = arith.constant 0 : index
    %4 = vector.load %arg3[%c0_3, %c0_4] : memref<1x256xf32, #tpu.memory_space<vmem>>, vector<1x256xf32>
    %5 = vector.broadcast %4 : vector<1x256xf32> to vector<8x256xf32>
    %6 = arith.addf %3, %5 : vector<8x256xf32>
    %cst_5 = arith.constant 0.000000e+00 : f32
    %7 = vector.broadcast %cst_5 : f32 to vector<8x256xf32>
    %8 = arith.maximumf %6, %7 : vector<8x256xf32>
    %9 = arith.truncf %8 : vector<8x256xf32> to vector<8x256xbf16>
    %c0_6 = arith.constant 0 : index
    %c0_7 = arith.constant 0 : index
    %10 = vector.load %arg4[%c0_6, %c0_7] : memref<256x256xbf16, #tpu.memory_space<vmem>>, vector<256x256xbf16>
    %cst_8 = arith.constant dense<0.000000e+00> : vector<8x256xf32>
    %11 = tpu.matmul %9, %10, %cst_8 {dimension_numbers = #tpu.dot_dimension_numbers<[1], [0], [0], [1], [0, 0, 1, 1], [], []>} : vector<8x256xbf16>, vector<256x256xbf16>, vector<8x256xf32> -> vector<8x256xf32>
    %c0_9 = arith.constant 0 : index
    %c0_10 = arith.constant 0 : index
    %12 = vector.load %arg5[%c0_9, %c0_10] : memref<1x256xf32, #tpu.memory_space<vmem>>, vector<1x256xf32>
    %13 = vector.broadcast %12 : vector<1x256xf32> to vector<8x256xf32>
    %14 = arith.addf %11, %13 : vector<8x256xf32>
    %c0_11 = arith.constant 0 : index
    %c0_12 = arith.constant 0 : index
    %15 = vector.load %arg6[%c0_11, %c0_12] : memref<8x256xf32, #tpu.memory_space<vmem>>, vector<8x256xf32>
    tpu.vector_store %arg6[%c0_11, %c0_12], %14 {strides = array<i32>} : memref<8x256xf32, #tpu.memory_space<vmem>>, vector<8x256xf32>,
    return
  }
  func.func @transform_0(%arg0: i32) -> (i32, i32) {
    %c0_i32 = arith.constant 0 : i32
    %c0_i32_0 = arith.constant 0 : i32
    return %arg0, %c0_i32 : i32, i32
  }
  func.func @transform_1(%arg0: i32) -> (i32, i32) {
    %c0_i32 = arith.constant 0 : i32
    %c0_i32_0 = arith.constant 0 : i32
    %c0_i32_1 = arith.constant 0 : i32
    return %c0_i32, %c0_i32_0 : i32, i32
  }
  func.func @transform_2(%arg0: i32) -> (i32, i32) {
    %c0_i32 = arith.constant 0 : i32
    %c0_i32_0 = arith.constant 0 : i32
    %c0_i32_1 = arith.constant 0 : i32
    return %c0_i32, %c0_i32_0 : i32, i32
  }
  func.func @transform_3(%arg0: i32) -> (i32, i32) {
    %c0_i32 = arith.constant 0 : i32
    %c0_i32_0 = arith.constant 0 : i32
    %c0_i32_1 = arith.constant 0 : i32
    return %c0_i32, %c0_i32_0 : i32, i32
  }
  func.func @transform_4(%arg0: i32) -> (i32, i32) {
    %c0_i32 = arith.constant 0 : i32
    %c0_i32_0 = arith.constant 0 : i32
    %c0_i32_1 = arith.constant 0 : i32
    return %c0_i32, %c0_i32_0 : i32, i32
  }
  func.func @transform_5(%arg0: i32) -> (i32, i32) {
    %c0_i32 = arith.constant 0 : i32
    %c0_i32_0 = arith.constant 0 : i32
    return %arg0, %c0_i32 : i32, i32
  }
}

</mosaic_0001>

<llo_original>
// kernel: tpu_custom_call.1
$region0: #{tpu_custom_call.1}
  #allocation0 [shape = 'u32[]', space=smem, size = 0x4, offset = 0x4, fixed_abs, tag = 'smem constant byte address 0x4 - core index']
  #allocation1 [shape = 'u32[72,128]{1,0:T(1,128)}', space=vmem, size = 0x9000, scoped, tag = 'internal scratch']
  %s0 = inlined_call_operand.hbm [shape: f32[8,1024], index: 0, kind: input, shape index: {}]
  %s1 = inlined_call_operand.hbm [shape: bf16[1024,256], index: 1, kind: input, shape index: {}]
  %s2 = inlined_call_operand.hbm [shape: f32[1,256], index: 2, kind: input, shape index: {}]
  %s3 = inlined_call_operand.hbm [shape: bf16[256,256], index: 3, kind: input, shape index: {}]
  %s4 = inlined_call_operand.vmem [shape: f32[1,256], index: 4, kind: input, shape index: {}]
  %s5 = inlined_call_operand.hbm [shape: f32[8,256], index: 5, kind: output, shape index: {}]
  %s6 = sld [smem:[#allocation0]]
  $region46: #{tpu_custom_call.1} parent=0
    _
  %s8 = ssub.s32 1, %s6
  %s9 = scalar_select 0, %s8, %s6
  $region1: #{tpu_custom_call.1} parent=0
    #allocation2 [shape = 'u8[32768]{0}', space=vmem, size = 0x8000, scoped, tag = 'input window, operand 0, single buffered']
    #allocation3 [shape = 's32[1]{0}', space=sflag, size = 0x4, scoped, tag = 'scoped memory for tpu_custom_call.1']
    #allocation4 [shape = 's32[1]{0}', space=sflag, size = 0x4, scoped, tag = 'scoped memory for tpu_custom_call.1']
    #allocation5 [shape = 'u8[524288]{0}', space=vmem, size = 0x80000, scoped, tag = 'input window, operand 1, single buffered']
    #allocation6 [shape = 's32[1]{0}', space=sflag, size = 0x4, scoped, tag = 'scoped memory for tpu_custom_call.1']
    #allocation7 [shape = 'u8[1024]{0}', space=vmem, size = 0x400, scoped, tag = 'input window, operand 2, single buffered']
    #allocation8 [shape = 'u8[131072]{0}', space=vmem, size = 0x20000, scoped, tag = 'input window, operand 3, single buffered']
    #allocation9 [shape = 's32[1]{0}', space=sflag, size = 0x4, scoped, tag = 'scoped memory for tpu_custom_call.1']
    #allocation10 [shape = 'u8[8192]{0}', space=vmem, size = 0x2000, scoped, tag = 'output window, operand 0, single buffered']
    %10 = vsyncpa [#allocation3], 0
    %11 = vsyncpa [#allocation6], 0
    %12 = vsyncpa [#allocation9], 0
    %13 = vsyncpa [#allocation4], 0
    // Predicated region
    $region2: #{tpu_custom_call.1} parent=1 // pred_check
      _
    $region3: #{tpu_custom_call.1} parent=1 // pred_check_branch
      %15 = sbr.rel (0) target = $region5
    $region4: #{tpu_custom_call.1} parent=1 // pred_region
      %17 = vsyncadd [#allocation3], 0
      %s19 = sshll.u32 %s0, 4
      %s20 = int_to_ptr.hbm [resolvable:$true] %s19
      %s21 = sshll.u32 [#allocation2], 4
      %s22 = int_to_ptr.vmem [resolvable:$true] %s21
      %24 = dma.hbm_to_vmem [thread:$0]  %s20, 1024, %s22, [#allocation3]
    $region5: #{tpu_custom_call.1} parent=1 // pred_fallthru
      _
    // Predicated region
    $region6: #{tpu_custom_call.1} parent=1 // pred_check
      _
    $region7: #{tpu_custom_call.1} parent=1 // pred_check_branch
      %26 = sbr.rel (0) target = $region9
    $region8: #{tpu_custom_call.1} parent=1 // pred_region
      %28 = vsyncadd [#allocation6], 0
      %s29 = sshll.u32 %s1, 4
      %s30 = int_to_ptr.hbm [resolvable:$true] %s29
      %s31 = sshll.u32 [#allocation5], 4
      %s32 = int_to_ptr.vmem [resolvable:$true] %s31
      %37 = dma.hbm_to_vmem [thread:$0]  %s30, 16384, %s32, [#allocation6], 128, 128, 8
    $region9: #{tpu_custom_call.1} parent=1 // pred_fallthru
      _
    // Predicated region
    $region10: #{tpu_custom_call.1} parent=1 // pred_check
      _
    $region11: #{tpu_custom_call.1} parent=1 // pred_check_branch
      %39 = sbr.rel (0) target = $region13
    $region12: #{tpu_custom_call.1} parent=1 // pred_region
      %41 = vsyncadd [#allocation6], 0
      %s43 = sshll.u32 %s2, 4
      %s44 = int_to_ptr.hbm [resolvable:$true] %s43
      %s45 = sshll.u32 [#allocation7], 4
      %s46 = int_to_ptr.vmem [resolvable:$true] %s45
      %48 = dma.hbm_to_vmem [thread:$0]  %s44, 32, %s46, [#allocation6]
    $region13: #{tpu_custom_call.1} parent=1 // pred_fallthru
      _
    // Predicated region
    $region14: #{tpu_custom_call.1} parent=1 // pred_check
      _
    $region15: #{tpu_custom_call.1} parent=1 // pred_check_branch
      %50 = sbr.rel (0) target = $region17
    $region16: #{tpu_custom_call.1} parent=1 // pred_region
      %52 = vsyncadd [#allocation9], 0
      %s53 = sshll.u32 %s3, 4
      %s54 = int_to_ptr.hbm [resolvable:$true] %s53
      %s55 = sshll.u32 [#allocation8], 4
      %s56 = int_to_ptr.vmem [resolvable:$true] %s55
      %61 = dma.hbm_to_vmem [thread:$0]  %s54, 4096, %s56, [#allocation9], 128, 128, 8
    $region17: #{tpu_custom_call.1} parent=1 // pred_fallthru
      _
    // Predicated region
    $region18: #{tpu_custom_call.1} parent=1 // pred_check
      _
    $region19: #{tpu_custom_call.1} parent=1 // pred_check_branch
      %63 = sbr.rel (0) target = $region21
    $region20: #{tpu_custom_call.1} parent=1 // pred_region
      _
    $region21: #{tpu_custom_call.1} parent=1 // pred_fallthru
      _
    // Predicated region
    $region22: #{tpu_custom_call.1} parent=1 // pred_check
      _
    $region23: #{tpu_custom_call.1} parent=1 // pred_check_branch
      %65 = sbr.rel (0) target = $region25
    $region24: #{tpu_custom_call.1} parent=1 // pred_region
      %67 = dma.done [#allocation3], 1024
    $region25: #{tpu_custom_call.1} parent=1 // pred_fallthru
      _
    // Predicated region
    $region26: #{tpu_custom_call.1} parent=1 // pred_check
      _
    $region27: #{tpu_custom_call.1} parent=1 // pred_check_branch
      %69 = sbr.rel (0) target = $region29
    $region28: #{tpu_custom_call.1} parent=1 // pred_region
      %71 = dma.done [#allocation6], 16384
    $region29: #{tpu_custom_call.1} parent=1 // pred_fallthru
      _
    // Predicated region
    $region30: #{tpu_custom_call.1} parent=1 // pred_check
      _
    $region31: #{tpu_custom_call.1} parent=1 // pred_check_branch
      %73 = sbr.rel (0) target = $region33
    $region32: #{tpu_custom_call.1} parent=1 // pred_region
      %75 = dma.done [#allocation6], 32
    $region33: #{tpu_custom_call.1} parent=1 // pred_fallthru
      _
    // Predicated region
    $region34: #{tpu_custom_call.1} parent=1 // pred_check
      _
    $region35: #{tpu_custom_call.1} parent=1 // pred_check_branch
      %77 = sbr.rel (0) target = $region37
    $region36: #{tpu_custom_call.1} parent=1 // pred_region
      %79 = dma.done [#allocation9], 4096
    $region37: #{tpu_custom_call.1} parent=1 // pred_fallthru
      _
    %v80 = vld [vmem:[#allocation2] sm:$0xff]
    %v81 = vld [vmem:[#allocation2 + $0x8] sm:$0xff]
    %v82 = vld [vmem:[#allocation2 + $0x10] sm:$0xff]
    %v83 = vld [vmem:[#allocation2 + $0x18] sm:$0xff]
    %v84 = vld [vmem:[#allocation2 + $0x20] sm:$0xff]
    %v85 = vld [vmem:[#allocation2 + $0x28] sm:$0xff]
    %v86 = vld [vmem:[#allocation2 + $0x30] sm:$0xff]
    %v87 = vld [vmem:[#allocation2 + $0x38] sm:$0xff]
    %v88 = vpack.c.bf16 %v80, %v80
    %v89 = vpack.c.bf16 %v81, %v81
    %v90 = vpack.c.bf16 %v82, %v82
    %v91 = vpack.c.bf16 %v83, %v83
    %v92 = vpack.c.bf16 %v84, %v84
    %v93 = vpack.c.bf16 %v85, %v85
    %v94 = vpack.c.bf16 %v86, %v86
    %v95 = vpack.c.bf16 %v87, %v87
    %v96 = vld [vmem:[#allocation5] sm:$0xff]
    %v97 = vld [vmem:[#allocation5 + $0x8] sm:$0xff]
    %v98 = vld [vmem:[#allocation5 + $0x10] sm:$0xff]
    %v99 = vld [vmem:[#allocation5 + $0x18] sm:$0xff]
    %v100 = vld [vmem:[#allocation5 + $0x20] sm:$0xff]
    %v101 = vld [vmem:[#allocation5 + $0x28] sm:$0xff]
    %v102 = vld [vmem:[#allocation5 + $0x30] sm:$0xff]
    %v103 = vld [vmem:[#allocation5 + $0x38] sm:$0xff]
    %v104 = vld [vmem:[#allocation5 + $0x40] sm:$0xff]
    %v105 = vld [vmem:[#allocation5 + $0x48] sm:$0xff]
    %v106 = vld [vmem:[#allocation5 + $0x50] sm:$0xff]
    %v107 = vld [vmem:[#allocation5 + $0x58] sm:$0xff]
    %v108 = vld [vmem:[#allocation5 + $0x60] sm:$0xff]
    %v109 = vld [vmem:[#allocation5 + $0x68] sm:$0xff]
    %v110 = vld [vmem:[#allocation5 + $0x70] sm:$0xff]
    %v111 = vld [vmem:[#allocation5 + $0x78] sm:$0xff]
    %v112 = vld [vmem:[#allocation5 + $0x80] sm:$0xff]
    %v113 = vld [vmem:[#allocation5 + $0x88] sm:$0xff]
    %v114 = vld [vmem:[#allocation5 + $0x90] sm:$0xff]
    %v115 = vld [vmem:[#allocation5 + $0x98] sm:$0xff]
    %v116 = vld [vmem:[#allocation5 + $0xa0] sm:$0xff]
    %v117 = vld [vmem:[#allocation5 + $0xa8] sm:$0xff]
    %v118 = vld [vmem:[#allocation5 + $0xb0] sm:$0xff]
    %v119 = vld [vmem:[#allocation5 + $0xb8] sm:$0xff]
    %v120 = vld [vmem:[#allocation5 + $0xc0] sm:$0xff]
    %v121 = vld [vmem:[#allocation5 + $0xc8] sm:$0xff]
    %v122 = vld [vmem:[#allocation5 + $0xd0] sm:$0xff]
    %v123 = vld [vmem:[#allocation5 + $0xd8] sm:$0xff]
    %v124 = vld [vmem:[#allocation5 + $0xe0] sm:$0xff]
    %v125 = vld [vmem:[#allocation5 + $0xe8] sm:$0xff]
    %v126 = vld [vmem:[#allocation5 + $0xf0] sm:$0xff]
    %v127 = vld [vmem:[#allocation5 + $0xf8] sm:$0xff]
    %v128 = vld [vmem:[#allocation5 + $0x100] sm:$0xff]
    %v129 = vld [vmem:[#allocation5 + $0x108] sm:$0xff]
    %v130 = vld [vmem:[#allocation5 + $0x110] sm:$0xff]
    %v131 = vld [vmem:[#allocation5 + $0x118] sm:$0xff]
    %v132 = vld [vmem:[#allocation5 + $0x120] sm:$0xff]
    %v133 = vld [vmem:[#allocation5 + $0x128] sm:$0xff]
    %v134 = vld [vmem:[#allocation5 + $0x130] sm:$0xff]
    %v135 = vld [vmem:[#allocation5 + $0x138] sm:$0xff]
    %v136 = vld [vmem:[#allocation5 + $0x140] sm:$0xff]
    %v137 = vld [vmem:[#allocation5 + $0x148] sm:$0xff]
    %v138 = vld [vmem:[#allocation5 + $0x150] sm:$0xff]
    %v139 = vld [vmem:[#allocation5 + $0x158] sm:$0xff]
    %v140 = vld [vmem:[#allocation5 + $0x160] sm:$0xff]
    %v141 = vld [vmem:[#allocation5 + $0x168] sm:$0xff]
    %v142 = vld [vmem:[#allocation5 + $0x170] sm:$0xff]
    %v143 = vld [vmem:[#allocation5 + $0x178] sm:$0xff]
    %v144 = vld [vmem:[#allocation5 + $0x180] sm:$0xff]
    %v145 = vld [vmem:[#allocation5 + $0x188] sm:$0xff]
    %v146 = vld [vmem:[#allocation5 + $0x190] sm:$0xff]
    %v147 = vld [vmem:[#allocation5 + $0x198] sm:$0xff]
    %v148 = vld [vmem:[#allocation5 + $0x1a0] sm:$0xff]
    %v149 = vld [vmem:[#allocation5 + $0x1a8] sm:$0xff]
    %v150 = vld [vmem:[#allocation5 + $0x1b0] sm:$0xff]
    %v151 = vld [vmem:[#allocation5 + $0x1b8] sm:$0xff]
    %v152 = vld [vmem:[#allocation5 + $0x1c0] sm:$0xff]
    %v153 = vld [vmem:[#allocation5 + $0x1c8] sm:$0xff]
    %v154 = vld [vmem:[#allocation5 + $0x1d0] sm:$0xff]
    %v155 = vld [vmem:[#allocation5 + $0x1d8] sm:$0xff]
    %v156 = vld [vmem:[#allocation5 + $0x1e0] sm:$0xff]
    %v157 = vld [vmem:[#allocation5 + $0x1e8] sm:$0xff]
    %v158 = vld [vmem:[#allocation5 + $0x1f0] sm:$0xff]
    %v159 = vld [vmem:[#allocation5 + $0x1f8] sm:$0xff]
    %v160 = vld [vmem:[#allocation5 + $0x200] sm:$0xff]
    %v161 = vld [vmem:[#allocation5 + $0x208] sm:$0xff]
    %v162 = vld [vmem:[#allocation5 + $0x210] sm:$0xff]
    %v163 = vld [vmem:[#allocation5 + $0x218] sm:$0xff]
    %v164 = vld [vmem:[#allocation5 + $0x220] sm:$0xff]
    %v165 = vld [vmem:[#allocation5 + $0x228] sm:$0xff]
    %v166 = vld [vmem:[#allocation5 + $0x230] sm:$0xff]
    %v167 = vld [vmem:[#allocation5 + $0x238] sm:$0xff]
    %v168 = vld [vmem:[#allocation5 + $0x240] sm:$0xff]
    %v169 = vld [vmem:[#allocation5 + $0x248] sm:$0xff]
    %v170 = vld [vmem:[#allocation5 + $0x250] sm:$0xff]
    %v171 = vld [vmem:[#allocation5 + $0x258] sm:$0xff]
    %v172 = vld [vmem:[#allocation5 + $0x260] sm:$0xff]
    %v173 = vld [vmem:[#allocation5 + $0x268] sm:$0xff]
    %v174 = vld [vmem:[#allocation5 + $0x270] sm:$0xff]
    %v175 = vld [vmem:[#allocation5 + $0x278] sm:$0xff]
    %v176 = vld [vmem:[#allocation5 + $0x280] sm:$0xff]
    %v177 = vld [vmem:[#allocation5 + $0x288] sm:$0xff]
    %v178 = vld [vmem:[#allocation5 + $0x290] sm:$0xff]
    %v179 = vld [vmem:[#allocation5 + $0x298] sm:$0xff]
    %v180 = vld [vmem:[#allocation5 + $0x2a0] sm:$0xff]
    %v181 = vld [vmem:[#allocation5 + $0x2a8] sm:$0xff]
    %v182 = vld [vmem:[#allocation5 + $0x2b0] sm:$0xff]
    %v183 = vld [vmem:[#allocation5 + $0x2b8] sm:$0xff]
    %v184 = vld [vmem:[#allocation5 + $0x2c0] sm:$0xff]
    %v185 = vld [vmem:[#allocation5 + $0x2c8] sm:$0xff]
    %v186 = vld [vmem:[#allocation5 + $0x2d0] sm:$0xff]
    %v187 = vld [vmem:[#allocation5 + $0x2d8] sm:$0xff]
    %v188 = vld [vmem:[#allocation5 + $0x2e0] sm:$0xff]
    %v189 = vld [vmem:[#allocation5 + $0x2e8] sm:$0xff]
    %v190 = vld [vmem:[#allocation5 + $0x2f0] sm:$0xff]
    %v191 = vld [vmem:[#allocation5 + $0x2f8] sm:$0xff]
    %v192 = vld [vmem:[#allocation5 + $0x300] sm:$0xff]
    %v193 = vld [vmem:[#allocation5 + $0x308] sm:$0xff]
    %v194 = vld [vmem:[#allocation5 + $0x310] sm:$0xff]
    %v195 = vld [vmem:[#allocation5 + $0x318] sm:$0xff]
    %v196 = vld [vmem:[#allocation5 + $0x320] sm:$0xff]
    %v197 = vld [vmem:[#allocation5 + $0x328] sm:$0xff]
    %v198 = vld [vmem:[#allocation5 + $0x330] sm:$0xff]
    %v199 = vld [vmem:[#allocation5 + $0x338] sm:$0xff]
    %v200 = vld [vmem:[#allocation5 + $0x340] sm:$0xff]
    %v201 = vld [vmem:[#allocation5 + $0x348] sm:$0xff]
    %v202 = vld [vmem:[#allocation5 + $0x350] sm:$0xff]
    %v203 = vld [vmem:[#allocation5 + $0x358] sm:$0xff]
    %v204 = vld [vmem:[#allocation5 + $0x360] sm:$0xff]
    %v205 = vld [vmem:[#allocation5 + $0x368] sm:$0xff]
    %v206 = vld [vmem:[#allocation5 + $0x370] sm:$0xff]
    %v207 = vld [vmem:[#allocation5 + $0x378] sm:$0xff]
    %v208 = vld [vmem:[#allocation5 + $0x380] sm:$0xff]
    %v209 = vld [vmem:[#allocation5 + $0x388] sm:$0xff]
    %v210 = vld [vmem:[#allocation5 + $0x390] sm:$0xff]
    %v211 = vld [vmem:[#allocation5 + $0x398] sm:$0xff]
    %v212 = vld [vmem:[#allocation5 + $0x3a0] sm:$0xff]
    %v213 = vld [vmem:[#allocation5 + $0x3a8] sm:$0xff]
    %v214 = vld [vmem:[#allocation5 + $0x3b0] sm:$0xff]
    %v215 = vld [vmem:[#allocation5 + $0x3b8] sm:$0xff]
    %v216 = vld [vmem:[#allocation5 + $0x3c0] sm:$0xff]
    %v217 = vld [vmem:[#allocation5 + $0x3c8] sm:$0xff]
    %v218 = vld [vmem:[#allocation5 + $0x3d0] sm:$0xff]
    %v219 = vld [vmem:[#allocation5 + $0x3d8] sm:$0xff]
    %v220 = vld [vmem:[#allocation5 + $0x3e0] sm:$0xff]
    %v221 = vld [vmem:[#allocation5 + $0x3e8] sm:$0xff]
    %v222 = vld [vmem:[#allocation5 + $0x3f0] sm:$0xff]
    %v223 = vld [vmem:[#allocation5 + $0x3f8] sm:$0xff]
    %v224 = vld [vmem:[#allocation7] sm:$0x3]
    %v226 = vperm.slane %v224, 0
    %v227 = vperm.slane %v224, 1
    %v358 = vunpack.c.l.b16 %v96
    %v359 = vunpack.c.h.b16 %v96
    %v360 = vunpack.c.l.b16 %v97
    %v361 = vunpack.c.h.b16 %v97
    %v362 = vunpack.c.l.b16 %v98
    %v363 = vunpack.c.h.b16 %v98
    %v364 = vunpack.c.l.b16 %v99
    %v365 = vunpack.c.h.b16 %v99
    %v366 = vunpack.c.l.b16 %v100
    %v367 = vunpack.c.h.b16 %v100
    %v368 = vunpack.c.l.b16 %v101
    %v369 = vunpack.c.h.b16 %v101
    %v370 = vunpack.c.l.b16 %v102
    %v371 = vunpack.c.h.b16 %v102
    %v372 = vunpack.c.l.b16 %v103
    %v373 = vunpack.c.h.b16 %v103
    %v374 = vunpack.c.l.b16 %v104
    %v375 = vunpack.c.h.b16 %v104
    %v376 = vunpack.c.l.b16 %v105
    %v377 = vunpack.c.h.b16 %v105
    %v378 = vunpack.c.l.b16 %v106
    %v379 = vunpack.c.h.b16 %v106
    %v380 = vunpack.c.l.b16 %v107
    %v381 = vunpack.c.h.b16 %v107
    %v382 = vunpack.c.l.b16 %v108
    %v383 = vunpack.c.h.b16 %v108
    %v384 = vunpack.c.l.b16 %v109
    %v385 = vunpack.c.h.b16 %v109
    %v386 = vunpack.c.l.b16 %v110
    %v387 = vunpack.c.h.b16 %v110
    %v388 = vunpack.c.l.b16 %v111
    %v389 = vunpack.c.h.b16 %v111
    %v390 = vunpack.c.l.b16 %v112
    %v391 = vunpack.c.h.b16 %v112
    %v392 = vunpack.c.l.b16 %v113
    %v393 = vunpack.c.h.b16 %v113
    %v394 = vunpack.c.l.b16 %v114
    %v395 = vunpack.c.h.b16 %v114
    %v396 = vunpack.c.l.b16 %v115
    %v397 = vunpack.c.h.b16 %v115
    %v398 = vunpack.c.l.b16 %v116
    %v399 = vunpack.c.h.b16 %v116
    %v400 = vunpack.c.l.b16 %v117
    %v401 = vunpack.c.h.b16 %v117
    %v402 = vunpack.c.l.b16 %v118
    %v403 = vunpack.c.h.b16 %v118
    %v404 = vunpack.c.l.b16 %v119
    %v405 = vunpack.c.h.b16 %v119
    %v406 = vunpack.c.l.b16 %v120
    %v407 = vunpack.c.h.b16 %v120
    %v408 = vunpack.c.l.b16 %v121
    %v409 = vunpack.c.h.b16 %v121
    %v410 = vunpack.c.l.b16 %v122
    %v411 = vunpack.c.h.b16 %v122
    %v412 = vunpack.c.l.b16 %v123
    %v413 = vunpack.c.h.b16 %v123
    %v414 = vunpack.c.l.b16 %v124
    %v415 = vunpack.c.h.b16 %v124
    %v416 = vunpack.c.l.b16 %v125
    %v417 = vunpack.c.h.b16 %v125
    %v418 = vunpack.c.l.b16 %v126
    %v419 = vunpack.c.h.b16 %v126
    %v420 = vunpack.c.l.b16 %v127
    %v421 = vunpack.c.h.b16 %v127
    %v422 = vunpack.c.l.b16 %v128
    %v423 = vunpack.c.h.b16 %v128
    %v424 = vunpack.c.l.b16 %v129
    %v425 = vunpack.c.h.b16 %v129
    %v426 = vunpack.c.l.b16 %v130
    %v427 = vunpack.c.h.b16 %v130
    %v428 = vunpack.c.l.b16 %v131
    %v429 = vunpack.c.h.b16 %v131
    %v430 = vunpack.c.l.b16 %v132
    %v431 = vunpack.c.h.b16 %v132
    %v432 = vunpack.c.l.b16 %v133
    %v433 = vunpack.c.h.b16 %v133
    %v434 = vunpack.c.l.b16 %v134
    %v435 = vunpack.c.h.b16 %v134
    %v436 = vunpack.c.l.b16 %v135
    %v437 = vunpack.c.h.b16 %v135
    %v438 = vunpack.c.l.b16 %v136
    %v439 = vunpack.c.h.b16 %v136
    %v440 = vunpack.c.l.b16 %v137
    %v441 = vunpack.c.h.b16 %v137
    %v442 = vunpack.c.l.b16 %v138
    %v443 = vunpack.c.h.b16 %v138
    %v444 = vunpack.c.l.b16 %v139
    %v445 = vunpack.c.h.b16 %v139
    %v446 = vunpack.c.l.b16 %v140
    %v447 = vunpack.c.h.b16 %v140
    %v448 = vunpack.c.l.b16 %v141
    %v449 = vunpack.c.h.b16 %v141
    %v450 = vunpack.c.l.b16 %v142
    %v451 = vunpack.c.h.b16 %v142
    %v452 = vunpack.c.l.b16 %v143
    %v453 = vunpack.c.h.b16 %v143
    %v454 = vunpack.c.l.b16 %v144
    %v455 = vunpack.c.h.b16 %v144
    %v456 = vunpack.c.l.b16 %v145
    %v457 = vunpack.c.h.b16 %v145
    %v458 = vunpack.c.l.b16 %v146
    %v459 = vunpack.c.h.b16 %v146
    %v460 = vunpack.c.l.b16 %v147
    %v461 = vunpack.c.h.b16 %v147
    %v462 = vunpack.c.l.b16 %v148
    %v463 = vunpack.c.h.b16 %v148
    %v464 = vunpack.c.l.b16 %v149
    %v465 = vunpack.c.h.b16 %v149
    %v466 = vunpack.c.l.b16 %v150
    %v467 = vunpack.c.h.b16 %v150
    %v468 = vunpack.c.l.b16 %v151
    %v469 = vunpack.c.h.b16 %v151
    %v470 = vunpack.c.l.b16 %v152
    %v471 = vunpack.c.h.b16 %v152
    %v472 = vunpack.c.l.b16 %v153
    %v473 = vunpack.c.h.b16 %v153
    %v474 = vunpack.c.l.b16 %v154
    %v475 = vunpack.c.h.b16 %v154
    %v476 = vunpack.c.l.b16 %v155
    %v477 = vunpack.c.h.b16 %v155
    %v478 = vunpack.c.l.b16 %v156
    %v479 = vunpack.c.h.b16 %v156
    %v480 = vunpack.c.l.b16 %v157
    %v481 = vunpack.c.h.b16 %v157
    %v482 = vunpack.c.l.b16 %v158
    %v483 = vunpack.c.h.b16 %v158
    %v484 = vunpack.c.l.b16 %v159
    %v485 = vunpack.c.h.b16 %v159
    %v486 = vunpack.c.l.b16 %v160
    %v487 = vunpack.c.h.b16 %v160
    %v488 = vunpack.c.l.b16 %v161
    %v489 = vunpack.c.h.b16 %v161
    %v490 = vunpack.c.l.b16 %v162
    %v491 = vunpack.c.h.b16 %v162
    %v492 = vunpack.c.l.b16 %v163
    %v493 = vunpack.c.h.b16 %v163
    %v494 = vunpack.c.l.b16 %v164
    %v495 = vunpack.c.h.b16 %v164
    %v496 = vunpack.c.l.b16 %v165
    %v497 = vunpack.c.h.b16 %v165
    %v498 = vunpack.c.l.b16 %v166
    %v499 = vunpack.c.h.b16 %v166
    %v500 = vunpack.c.l.b16 %v167
    %v501 = vunpack.c.h.b16 %v167
    %v502 = vunpack.c.l.b16 %v168
    %v503 = vunpack.c.h.b16 %v168
    %v504 = vunpack.c.l.b16 %v169
    %v505 = vunpack.c.h.b16 %v169
    %v506 = vunpack.c.l.b16 %v170
    %v507 = vunpack.c.h.b16 %v170
    %v508 = vunpack.c.l.b16 %v171
    %v509 = vunpack.c.h.b16 %v171
    %v510 = vunpack.c.l.b16 %v172
    %v511 = vunpack.c.h.b16 %v172
    %v512 = vunpack.c.l.b16 %v173
    %v513 = vunpack.c.h.b16 %v173
    %v514 = vunpack.c.l.b16 %v174
    %v515 = vunpack.c.h.b16 %v174
    %v516 = vunpack.c.l.b16 %v175
    %v517 = vunpack.c.h.b16 %v175
    %v518 = vunpack.c.l.b16 %v176
    %v519 = vunpack.c.h.b16 %v176
    %v520 = vunpack.c.l.b16 %v177
    %v521 = vunpack.c.h.b16 %v177
    %v522 = vunpack.c.l.b16 %v178
    %v523 = vunpack.c.h.b16 %v178
    %v524 = vunpack.c.l.b16 %v179
    %v525 = vunpack.c.h.b16 %v179
    %v526 = vunpack.c.l.b16 %v180
    %v527 = vunpack.c.h.b16 %v180
    %v528 = vunpack.c.l.b16 %v181
    %v529 = vunpack.c.h.b16 %v181
    %v530 = vunpack.c.l.b16 %v182
    %v531 = vunpack.c.h.b16 %v182
    %v532 = vunpack.c.l.b16 %v183
    %v533 = vunpack.c.h.b16 %v183
    %v534 = vunpack.c.l.b16 %v184
    %v535 = vunpack.c.h.b16 %v184
    %v536 = vunpack.c.l.b16 %v185
    %v537 = vunpack.c.h.b16 %v185
    %v538 = vunpack.c.l.b16 %v186
    %v539 = vunpack.c.h.b16 %v186
    %v540 = vunpack.c.l.b16 %v187
    %v541 = vunpack.c.h.b16 %v187
    %v542 = vunpack.c.l.b16 %v188
    %v543 = vunpack.c.h.b16 %v188
    %v544 = vunpack.c.l.b16 %v189
    %v545 = vunpack.c.h.b16 %v189
    %v546 = vunpack.c.l.b16 %v190
    %v547 = vunpack.c.h.b16 %v190
    %v548 = vunpack.c.l.b16 %v191
    %v549 = vunpack.c.h.b16 %v191
    %v550 = vunpack.c.l.b16 %v192
    %v551 = vunpack.c.h.b16 %v192
    %v552 = vunpack.c.l.b16 %v193
    %v553 = vunpack.c.h.b16 %v193
    %v554 = vunpack.c.l.b16 %v194
    %v555 = vunpack.c.h.b16 %v194
    %v556 = vunpack.c.l.b16 %v195
    %v557 = vunpack.c.h.b16 %v195
    %v558 = vunpack.c.l.b16 %v196
    %v559 = vunpack.c.h.b16 %v196
    %v560 = vunpack.c.l.b16 %v197
    %v561 = vunpack.c.h.b16 %v197
    %v562 = vunpack.c.l.b16 %v198
    %v563 = vunpack.c.h.b16 %v198
    %v564 = vunpack.c.l.b16 %v199
    %v565 = vunpack.c.h.b16 %v199
    %v566 = vunpack.c.l.b16 %v200
    %v567 = vunpack.c.h.b16 %v200
    %v568 = vunpack.c.l.b16 %v201
    %v569 = vunpack.c.h.b16 %v201
    %v570 = vunpack.c.l.b16 %v202
    %v571 = vunpack.c.h.b16 %v202
    %v572 = vunpack.c.l.b16 %v203
    %v573 = vunpack.c.h.b16 %v203
    %v574 = vunpack.c.l.b16 %v204
    %v575 = vunpack.c.h.b16 %v204
    %v576 = vunpack.c.l.b16 %v205
    %v577 = vunpack.c.h.b16 %v205
    %v578 = vunpack.c.l.b16 %v206
    %v579 = vunpack.c.h.b16 %v206
    %v580 = vunpack.c.l.b16 %v207
    %v581 = vunpack.c.h.b16 %v207
    %v582 = vunpack.c.l.b16 %v208
    %v583 = vunpack.c.h.b16 %v208
    %v584 = vunpack.c.l.b16 %v209
    %v585 = vunpack.c.h.b16 %v209
    %v586 = vunpack.c.l.b16 %v210
    %v587 = vunpack.c.h.b16 %v210
    %v588 = vunpack.c.l.b16 %v211
    %v589 = vunpack.c.h.b16 %v211
    %v590 = vunpack.c.l.b16 %v212
    %v591 = vunpack.c.h.b16 %v212
    %v592 = vunpack.c.l.b16 %v213
    %v593 = vunpack.c.h.b16 %v213
    %v594 = vunpack.c.l.b16 %v214
    %v595 = vunpack.c.h.b16 %v214
    %v596 = vunpack.c.l.b16 %v215
    %v597 = vunpack.c.h.b16 %v215
    %v598 = vunpack.c.l.b16 %v216
    %v599 = vunpack.c.h.b16 %v216
    %v600 = vunpack.c.l.b16 %v217
    %v601 = vunpack.c.h.b16 %v217
    %v602 = vunpack.c.l.b16 %v218
    %v603 = vunpack.c.h.b16 %v218
    %v604 = vunpack.c.l.b16 %v219
    %v605 = vunpack.c.h.b16 %v219
    %v606 = vunpack.c.l.b16 %v220
    %v607 = vunpack.c.h.b16 %v220
    %v608 = vunpack.c.l.b16 %v221
    %v609 = vunpack.c.h.b16 %v221
    %v610 = vunpack.c.l.b16 %v222
    %v611 = vunpack.c.h.b16 %v222
    %v612 = vunpack.c.l.b16 %v223
    %v613 = vunpack.c.h.b16 %v223
    %v614 = vpack.c.b16 %v360, %v358
    %v615 = vpack.c.b16 %v361, %v359
    %v616 = vpack.c.b16 %v364, %v362
    %v617 = vpack.c.b16 %v365, %v363
    %v618 = vpack.c.b16 %v368, %v366
    %v619 = vpack.c.b16 %v369, %v367
    %v620 = vpack.c.b16 %v372, %v370
    %v621 = vpack.c.b16 %v373, %v371
    %v622 = vpack.c.b16 %v376, %v374
    %v623 = vpack.c.b16 %v377, %v375
    %v624 = vpack.c.b16 %v380, %v378
    %v625 = vpack.c.b16 %v381, %v379
    %v626 = vpack.c.b16 %v384, %v382
    %v627 = vpack.c.b16 %v385, %v383
    %v628 = vpack.c.b16 %v388, %v386
    %v629 = vpack.c.b16 %v389, %v387
    %v630 = vpack.c.b16 %v392, %v390
    %v631 = vpack.c.b16 %v393, %v391
    %v632 = vpack.c.b16 %v396, %v394
    %v633 = vpack.c.b16 %v397, %v395
    %v634 = vpack.c.b16 %v400, %v398
    %v635 = vpack.c.b16 %v401, %v399
    %v636 = vpack.c.b16 %v404, %v402
    %v637 = vpack.c.b16 %v405, %v403
    %v638 = vpack.c.b16 %v408, %v406
    %v639 = vpack.c.b16 %v409, %v407
    %v640 = vpack.c.b16 %v412, %v410
    %v641 = vpack.c.b16 %v413, %v411
    %v642 = vpack.c.b16 %v416, %v414
    %v643 = vpack.c.b16 %v417, %v415
    %v644 = vpack.c.b16 %v420, %v418
    %v645 = vpack.c.b16 %v421, %v419
    %v646 = vpack.c.b16 %v424, %v422
    %v647 = vpack.c.b16 %v425, %v423
    %v648 = vpack.c.b16 %v428, %v426
    %v649 = vpack.c.b16 %v429, %v427
    %v650 = vpack.c.b16 %v432, %v430
    %v651 = vpack.c.b16 %v433, %v431
    %v652 = vpack.c.b16 %v436, %v434
    %v653 = vpack.c.b16 %v437, %v435
    %v654 = vpack.c.b16 %v440, %v438
    %v655 = vpack.c.b16 %v441, %v439
    %v656 = vpack.c.b16 %v444, %v442
    %v657 = vpack.c.b16 %v445, %v443
    %v658 = vpack.c.b16 %v448, %v446
    %v659 = vpack.c.b16 %v449, %v447
    %v660 = vpack.c.b16 %v452, %v450
    %v661 = vpack.c.b16 %v453, %v451
    %v662 = vpack.c.b16 %v456, %v454
    %v663 = vpack.c.b16 %v457, %v455
    %v664 = vpack.c.b16 %v460, %v458
    %v665 = vpack.c.b16 %v461, %v459
    %v666 = vpack.c.b16 %v464, %v462
    %v667 = vpack.c.b16 %v465, %v463
    %v668 = vpack.c.b16 %v468, %v466
    %v669 = vpack.c.b16 %v469, %v467
    %v670 = vpack.c.b16 %v472, %v470
    %v671 = vpack.c.b16 %v473, %v471
    %v672 = vpack.c.b16 %v476, %v474
    %v673 = vpack.c.b16 %v477, %v475
    %v674 = vpack.c.b16 %v480, %v478
    %v675 = vpack.c.b16 %v481, %v479
    %v676 = vpack.c.b16 %v484, %v482
    %v677 = vpack.c.b16 %v485, %v483
    %v678 = vpack.c.b16 %v488, %v486
    %v679 = vpack.c.b16 %v489, %v487
    %v680 = vpack.c.b16 %v492, %v490
    %v681 = vpack.c.b16 %v493, %v491
    %v682 = vpack.c.b16 %v496, %v494
    %v683 = vpack.c.b16 %v497, %v495
    %v684 = vpack.c.b16 %v500, %v498
    %v685 = vpack.c.b16 %v501, %v499
    %v686 = vpack.c.b16 %v504, %v502
    %v687 = vpack.c.b16 %v505, %v503
    %v688 = vpack.c.b16 %v508, %v506
    %v689 = vpack.c.b16 %v509, %v507
    %v690 = vpack.c.b16 %v512, %v510
    %v691 = vpack.c.b16 %v513, %v511
    %v692 = vpack.c.b16 %v516, %v514
    %v693 = vpack.c.b16 %v517, %v515
    %v694 = vpack.c.b16 %v520, %v518
    %v695 = vpack.c.b16 %v521, %v519
    %v696 = vpack.c.b16 %v524, %v522
    %v697 = vpack.c.b16 %v525, %v523
    %v698 = vpack.c.b16 %v528, %v526
    %v699 = vpack.c.b16 %v529, %v527
    %v700 = vpack.c.b16 %v532, %v530
    %v701 = vpack.c.b16 %v533, %v531
    %v702 = vpack.c.b16 %v536, %v534
    %v703 = vpack.c.b16 %v537, %v535
    %v704 = vpack.c.b16 %v540, %v538
    %v705 = vpack.c.b16 %v541, %v539
    %v706 = vpack.c.b16 %v544, %v542
    %v707 = vpack.c.b16 %v545, %v543
    %v708 = vpack.c.b16 %v548, %v546
    %v709 = vpack.c.b16 %v549, %v547
    %v710 = vpack.c.b16 %v552, %v550
    %v711 = vpack.c.b16 %v553, %v551
    %v712 = vpack.c.b16 %v556, %v554
    %v713 = vpack.c.b16 %v557, %v555
    %v714 = vpack.c.b16 %v560, %v558
    %v715 = vpack.c.b16 %v561, %v559
    %v716 = vpack.c.b16 %v564, %v562
    %v717 = vpack.c.b16 %v565, %v563
    %v718 = vpack.c.b16 %v568, %v566
    %v719 = vpack.c.b16 %v569, %v567
    %v720 = vpack.c.b16 %v572, %v570
    %v721 = vpack.c.b16 %v573, %v571
    %v722 = vpack.c.b16 %v576, %v574
    %v723 = vpack.c.b16 %v577, %v575
    %v724 = vpack.c.b16 %v580, %v578
    %v725 = vpack.c.b16 %v581, %v579
    %v726 = vpack.c.b16 %v584, %v582
    %v727 = vpack.c.b16 %v585, %v583
    %v728 = vpack.c.b16 %v588, %v586
    %v729 = vpack.c.b16 %v589, %v587
    %v730 = vpack.c.b16 %v592, %v590
    %v731 = vpack.c.b16 %v593, %v591
    %v732 = vpack.c.b16 %v596, %v594
    %v733 = vpack.c.b16 %v597, %v595
    %v734 = vpack.c.b16 %v600, %v598
    %v735 = vpack.c.b16 %v601, %v599
    %v736 = vpack.c.b16 %v604, %v602
    %v737 = vpack.c.b16 %v605, %v603
    %v738 = vpack.c.b16 %v608, %v606
    %v739 = vpack.c.b16 %v609, %v607
    %v740 = vpack.c.b16 %v612, %v610
    %v741 = vpack.c.b16 %v613, %v611
    %870 = vmatpush.bf16.msra.mxu0 %v628
    %871 = vmatpush.bf16.msra.mxu0 %v626
    %872 = vmatpush.bf16.msra.mxu0 %v624
    %873 = vmatpush.bf16.msra.mxu0 %v622
    %874 = vmatpush.bf16.msra.mxu0 %v620
    %875 = vmatpush.bf16.msra.mxu0 %v618
    %876 = vmatpush.bf16.msra.mxu0 %v616
    %877 = vmatpush.bf16.msra.mxu0 %v614
    %878 = vmatmul.bf16.gmra.mxu0 %v88
    %v879 = vpop.f32.mrf.mxu0
    %v880 = vadd.f32 %v226, %v879
    %v881 = vpop.f32.mrf.mxu0
    %882 = vdwg.mxu0
    %883 = vmatpush.bf16.msra.mxu0 %v644
    %884 = vmatpush.bf16.msra.mxu0 %v642
    %885 = vmatpush.bf16.msra.mxu0 %v640
    %886 = vmatpush.bf16.msra.mxu0 %v638
    %887 = vmatpush.bf16.msra.mxu0 %v636
    %888 = vmatpush.bf16.msra.mxu0 %v634
    %889 = vmatpush.bf16.msra.mxu0 %v632
    %890 = vmatpush.bf16.msra.mxu0 %v630
    %891 = vmatmul.bf16.gmra.mxu0 %v89
    %v892 = vpop.f32.mrf.mxu0
    %v893 = vadd.f32 %v880, %v892
    %v894 = vpop.f32.mrf.mxu0
    %895 = vdwg.mxu0
    %896 = vmatpush.bf16.msra.mxu0 %v660
    %897 = vmatpush.bf16.msra.mxu0 %v658
    %898 = vmatpush.bf16.msra.mxu0 %v656
    %899 = vmatpush.bf16.msra.mxu0 %v654
    %900 = vmatpush.bf16.msra.mxu0 %v652
    %901 = vmatpush.bf16.msra.mxu0 %v650
    %902 = vmatpush.bf16.msra.mxu0 %v648
    %903 = vmatpush.bf16.msra.mxu0 %v646
    %904 = vmatmul.bf16.gmra.mxu0 %v90
    %v905 = vpop.f32.mrf.mxu0
    %v906 = vadd.f32 %v893, %v905
    %v907 = vpop.f32.mrf.mxu0
    %908 = vdwg.mxu0
    %909 = vmatpush.bf16.msra.mxu0 %v676
    %910 = vmatpush.bf16.msra.mxu0 %v674
    %911 = vmatpush.bf16.msra.mxu0 %v672
    %912 = vmatpush.bf16.msra.mxu0 %v670
    %913 = vmatpush.bf16.msra.mxu0 %v668
    %914 = vmatpush.bf16.msra.mxu0 %v666
    %915 = vmatpush.bf16.msra.mxu0 %v664
    %916 = vmatpush.bf16.msra.mxu0 %v662
    %917 = vmatmul.bf16.gmra.mxu0 %v91
    %v918 = vpop.f32.mrf.mxu0
    %v919 = vadd.f32 %v906, %v918
    %v920 = vpop.f32.mrf.mxu0
    %921 = vdwg.mxu0
    %922 = vmatpush.bf16.msra.mxu0 %v692
    %923 = vmatpush.bf16.msra.mxu0 %v690
    %924 = vmatpush.bf16.msra.mxu0 %v688
    %925 = vmatpush.bf16.msra.mxu0 %v686
    %926 = vmatpush.bf16.msra.mxu0 %v684
    %927 = vmatpush.bf16.msra.mxu0 %v682
    %928 = vmatpush.bf16.msra.mxu0 %v680
    %929 = vmatpush.bf16.msra.mxu0 %v678
    %930 = vmatmul.bf16.gmra.mxu0 %v92
    %v931 = vpop.f32.mrf.mxu0
    %v932 = vadd.f32 %v919, %v931
    %v933 = vpop.f32.mrf.mxu0
    %934 = vdwg.mxu0
    %935 = vmatpush.bf16.msra.mxu0 %v708
    %936 = vmatpush.bf16.msra.mxu0 %v706
    %937 = vmatpush.bf16.msra.mxu0 %v704
    %938 = vmatpush.bf16.msra.mxu0 %v702
    %939 = vmatpush.bf16.msra.mxu0 %v700
    %940 = vmatpush.bf16.msra.mxu0 %v698
    %941 = vmatpush.bf16.msra.mxu0 %v696
    %942 = vmatpush.bf16.msra.mxu0 %v694
    %943 = vmatmul.bf16.gmra.mxu0 %v93
    %v944 = vpop.f32.mrf.mxu0
    %v945 = vadd.f32 %v932, %v944
    %v946 = vpop.f32.mrf.mxu0
    %947 = vdwg.mxu0
    %948 = vmatpush.bf16.msra.mxu0 %v724
    %949 = vmatpush.bf16.msra.mxu0 %v722
    %950 = vmatpush.bf16.msra.mxu0 %v720
    %951 = vmatpush.bf16.msra.mxu0 %v718
    %952 = vmatpush.bf16.msra.mxu0 %v716
    %953 = vmatpush.bf16.msra.mxu0 %v714
    %954 = vmatpush.bf16.msra.mxu0 %v712
    %955 = vmatpush.bf16.msra.mxu0 %v710
    %956 = vmatmul.bf16.gmra.mxu0 %v94
    %v957 = vpop.f32.mrf.mxu0
    %v958 = vadd.f32 %v945, %v957
    %v959 = vpop.f32.mrf.mxu0
    %960 = vdwg.mxu0
    %961 = vmatpush.bf16.msra.mxu0 %v740
    %962 = vmatpush.bf16.msra.mxu0 %v738
    %963 = vmatpush.bf16.msra.mxu0 %v736
    %964 = vmatpush.bf16.msra.mxu0 %v734
    %965 = vmatpush.bf16.msra.mxu0 %v732
    %966 = vmatpush.bf16.msra.mxu0 %v730
    %967 = vmatpush.bf16.msra.mxu0 %v728
    %968 = vmatpush.bf16.msra.mxu0 %v726
    %969 = vmatmul.bf16.gmra.mxu0 %v95
    %v970 = vpop.f32.mrf.mxu0
    %v971 = vadd.f32 %v958, %v970
    %v972 = vpop.f32.mrf.mxu0
    %973 = vdwg.mxu0
    %974 = vmatpush.bf16.msra.mxu0 %v629
    %975 = vmatpush.bf16.msra.mxu0 %v627
    %976 = vmatpush.bf16.msra.mxu0 %v625
    %977 = vmatpush.bf16.msra.mxu0 %v623
    %978 = vmatpush.bf16.msra.mxu0 %v621
    %979 = vmatpush.bf16.msra.mxu0 %v619
    %980 = vmatpush.bf16.msra.mxu0 %v617
    %981 = vmatpush.bf16.msra.mxu0 %v615
    %982 = vmatmul.bf16.gmra.mxu0 %v88
    %v983 = vpop.f32.mrf.mxu0
    %v984 = vadd.f32 %v227, %v983
    %v985 = vpop.f32.mrf.mxu0
    %986 = vdwg.mxu0
    %987 = vmatpush.bf16.msra.mxu0 %v645
    %988 = vmatpush.bf16.msra.mxu0 %v643
    %989 = vmatpush.bf16.msra.mxu0 %v641
    %990 = vmatpush.bf16.msra.mxu0 %v639
    %991 = vmatpush.bf16.msra.mxu0 %v637
    %992 = vmatpush.bf16.msra.mxu0 %v635
    %993 = vmatpush.bf16.msra.mxu0 %v633
    %994 = vmatpush.bf16.msra.mxu0 %v631
    %995 = vmatmul.bf16.gmra.mxu0 %v89
    %v996 = vpop.f32.mrf.mxu0
    %v997 = vadd.f32 %v984, %v996
    %v998 = vpop.f32.mrf.mxu0
    %999 = vdwg.mxu0
    %1000 = vmatpush.bf16.msra.mxu0 %v661
    %1001 = vmatpush.bf16.msra.mxu0 %v659
    %1002 = vmatpush.bf16.msra.mxu0 %v657
    %1003 = vmatpush.bf16.msra.mxu0 %v655
    %1004 = vmatpush.bf16.msra.mxu0 %v653
    %1005 = vmatpush.bf16.msra.mxu0 %v651
    %1006 = vmatpush.bf16.msra.mxu0 %v649
    %1007 = vmatpush.bf16.msra.mxu0 %v647
    %1008 = vmatmul.bf16.gmra.mxu0 %v90
    %v1009 = vpop.f32.mrf.mxu0
    %v1010 = vadd.f32 %v997, %v1009
    %v1011 = vpop.f32.mrf.mxu0
    %1012 = vdwg.mxu0
    %1013 = vmatpush.bf16.msra.mxu0 %v677
    %1014 = vmatpush.bf16.msra.mxu0 %v675
    %1015 = vmatpush.bf16.msra.mxu0 %v673
    %1016 = vmatpush.bf16.msra.mxu0 %v671
    %1017 = vmatpush.bf16.msra.mxu0 %v669
    %1018 = vmatpush.bf16.msra.mxu0 %v667
    %1019 = vmatpush.bf16.msra.mxu0 %v665
    %1020 = vmatpush.bf16.msra.mxu0 %v663
    %1021 = vmatmul.bf16.gmra.mxu0 %v91
    %v1022 = vpop.f32.mrf.mxu0
    %v1023 = vadd.f32 %v1010, %v1022
    %v1024 = vpop.f32.mrf.mxu0
    %1025 = vdwg.mxu0
    %1026 = vmatpush.bf16.msra.mxu0 %v693
    %1027 = vmatpush.bf16.msra.mxu0 %v691
    %1028 = vmatpush.bf16.msra.mxu0 %v689
    %1029 = vmatpush.bf16.msra.mxu0 %v687
    %1030 = vmatpush.bf16.msra.mxu0 %v685
    %1031 = vmatpush.bf16.msra.mxu0 %v683
    %1032 = vmatpush.bf16.msra.mxu0 %v681
    %1033 = vmatpush.bf16.msra.mxu0 %v679
    %1034 = vmatmul.bf16.gmra.mxu0 %v92
    %v1035 = vpop.f32.mrf.mxu0
    %v1036 = vadd.f32 %v1023, %v1035
    %v1037 = vpop.f32.mrf.mxu0
    %1038 = vdwg.mxu0
    %1039 = vmatpush.bf16.msra.mxu0 %v709
    %1040 = vmatpush.bf16.msra.mxu0 %v707
    %1041 = vmatpush.bf16.msra.mxu0 %v705
    %1042 = vmatpush.bf16.msra.mxu0 %v703
    %1043 = vmatpush.bf16.msra.mxu0 %v701
    %1044 = vmatpush.bf16.msra.mxu0 %v699
    %1045 = vmatpush.bf16.msra.mxu0 %v697
    %1046 = vmatpush.bf16.msra.mxu0 %v695
    %1047 = vmatmul.bf16.gmra.mxu0 %v93
    %v1048 = vpop.f32.mrf.mxu0
    %v1049 = vadd.f32 %v1036, %v1048
    %v1050 = vpop.f32.mrf.mxu0
    %1051 = vdwg.mxu0
    %1052 = vmatpush.bf16.msra.mxu0 %v725
    %1053 = vmatpush.bf16.msra.mxu0 %v723
    %1054 = vmatpush.bf16.msra.mxu0 %v721
    %1055 = vmatpush.bf16.msra.mxu0 %v719
    %1056 = vmatpush.bf16.msra.mxu0 %v717
    %1057 = vmatpush.bf16.msra.mxu0 %v715
    %1058 = vmatpush.bf16.msra.mxu0 %v713
    %1059 = vmatpush.bf16.msra.mxu0 %v711
    %1060 = vmatmul.bf16.gmra.mxu0 %v94
    %v1061 = vpop.f32.mrf.mxu0
    %v1062 = vadd.f32 %v1049, %v1061
    %v1063 = vpop.f32.mrf.mxu0
    %1064 = vdwg.mxu0
    %1065 = vmatpush.bf16.msra.mxu0 %v741
    %1066 = vmatpush.bf16.msra.mxu0 %v739
    %1067 = vmatpush.bf16.msra.mxu0 %v737
    %1068 = vmatpush.bf16.msra.mxu0 %v735
    %1069 = vmatpush.bf16.msra.mxu0 %v733
    %1070 = vmatpush.bf16.msra.mxu0 %v731
    %1071 = vmatpush.bf16.msra.mxu0 %v729
    %1072 = vmatpush.bf16.msra.mxu0 %v727
    %1073 = vmatmul.bf16.gmra.mxu0 %v95
    %v1074 = vpop.f32.mrf.mxu0
    %v1075 = vadd.f32 %v1062, %v1074
    %v1076 = vpop.f32.mrf.mxu0
    %1077 = vdwg.mxu0
    %v1078 = vmax.f32 %v971, 0.0
    %v1079 = vmax.f32 %v1075, 0.0
    %v1080 = vpack.c.bf16 %v1078, %v1078
    %v1081 = vpack.c.bf16 %v1079, %v1079
    %v1082 = vld [vmem:[#allocation8] sm:$0xff]
    %v1083 = vld [vmem:[#allocation8 + $0x8] sm:$0xff]
    %v1084 = vld [vmem:[#allocation8 + $0x10] sm:$0xff]
    %v1085 = vld [vmem:[#allocation8 + $0x18] sm:$0xff]
    %v1086 = vld [vmem:[#allocation8 + $0x20] sm:$0xff]
    %v1087 = vld [vmem:[#allocation8 + $0x28] sm:$0xff]
    %v1088 = vld [vmem:[#allocation8 + $0x30] sm:$0xff]
    %v1089 = vld [vmem:[#allocation8 + $0x38] sm:$0xff]
    %v1090 = vld [vmem:[#allocation8 + $0x40] sm:$0xff]
    %v1091 = vld [vmem:[#allocation8 + $0x48] sm:$0xff]
    %v1092 = vld [vmem:[#allocation8 + $0x50] sm:$0xff]
    %v1093 = vld [vmem:[#allocation8 + $0x58] sm:$0xff]
    %v1094 = vld [vmem:[#allocation8 + $0x60] sm:$0xff]
    %v1095 = vld [vmem:[#allocation8 + $0x68] sm:$0xff]
    %v1096 = vld [vmem:[#allocation8 + $0x70] sm:$0xff]
    %v1097 = vld [vmem:[#allocation8 + $0x78] sm:$0xff]
    %v1098 = vld [vmem:[#allocation8 + $0x80] sm:$0xff]
    %v1099 = vld [vmem:[#allocation8 + $0x88] sm:$0xff]
    %v1100 = vld [vmem:[#allocation8 + $0x90] sm:$0xff]
    %v1101 = vld [vmem:[#allocation8 + $0x98] sm:$0xff]
    %v1102 = vld [vmem:[#allocation8 + $0xa0] sm:$0xff]
    %v1103 = vld [vmem:[#allocation8 + $0xa8] sm:$0xff]
    %v1104 = vld [vmem:[#allocation8 + $0xb0] sm:$0xff]
    %v1105 = vld [vmem:[#allocation8 + $0xb8] sm:$0xff]
    %v1106 = vld [vmem:[#allocation8 + $0xc0] sm:$0xff]
    %v1107 = vld [vmem:[#allocation8 + $0xc8] sm:$0xff]
    %v1108 = vld [vmem:[#allocation8 + $0xd0] sm:$0xff]
    %v1109 = vld [vmem:[#allocation8 + $0xd8] sm:$0xff]
    %v1110 = vld [vmem:[#allocation8 + $0xe0] sm:$0xff]
    %v1111 = vld [vmem:[#allocation8 + $0xe8] sm:$0xff]
    %v1112 = vld [vmem:[#allocation8 + $0xf0] sm:$0xff]
    %v1113 = vld [vmem:[#allocation8 + $0xf8] sm:$0xff]
    %v1114 = vld [vmem:[%s4] sm:$0x3]
    %v1116 = vperm.slane %v1114, 0
    %v1117 = vperm.slane %v1114, 1
    %v1152 = vunpack.c.l.b16 %v1082
    %v1153 = vunpack.c.h.b16 %v1082
    %v1154 = vunpack.c.l.b16 %v1083
    %v1155 = vunpack.c.h.b16 %v1083
    %v1156 = vunpack.c.l.b16 %v1084
    %v1157 = vunpack.c.h.b16 %v1084
    %v1158 = vunpack.c.l.b16 %v1085
    %v1159 = vunpack.c.h.b16 %v1085
    %v1160 = vunpack.c.l.b16 %v1086
    %v1161 = vunpack.c.h.b16 %v1086
    %v1162 = vunpack.c.l.b16 %v1087
    %v1163 = vunpack.c.h.b16 %v1087
    %v1164 = vunpack.c.l.b16 %v1088
    %v1165 = vunpack.c.h.b16 %v1088
    %v1166 = vunpack.c.l.b16 %v1089
    %v1167 = vunpack.c.h.b16 %v1089
    %v1168 = vunpack.c.l.b16 %v1090
    %v1169 = vunpack.c.h.b16 %v1090
    %v1170 = vunpack.c.l.b16 %v1091
    %v1171 = vunpack.c.h.b16 %v1091
    %v1172 = vunpack.c.l.b16 %v1092
    %v1173 = vunpack.c.h.b16 %v1092
    %v1174 = vunpack.c.l.b16 %v1093
    %v1175 = vunpack.c.h.b16 %v1093
    %v1176 = vunpack.c.l.b16 %v1094
    %v1177 = vunpack.c.h.b16 %v1094
    %v1178 = vunpack.c.l.b16 %v1095
    %v1179 = vunpack.c.h.b16 %v1095
    %v1180 = vunpack.c.l.b16 %v1096
    %v1181 = vunpack.c.h.b16 %v1096
    %v1182 = vunpack.c.l.b16 %v1097
    %v1183 = vunpack.c.h.b16 %v1097
    %v1184 = vunpack.c.l.b16 %v1098
    %v1185 = vunpack.c.h.b16 %v1098
    %v1186 = vunpack.c.l.b16 %v1099
    %v1187 = vunpack.c.h.b16 %v1099
    %v1188 = vunpack.c.l.b16 %v1100
    %v1189 = vunpack.c.h.b16 %v1100
    %v1190 = vunpack.c.l.b16 %v1101
    %v1191 = vunpack.c.h.b16 %v1101
    %v1192 = vunpack.c.l.b16 %v1102
    %v1193 = vunpack.c.h.b16 %v1102
    %v1194 = vunpack.c.l.b16 %v1103
    %v1195 = vunpack.c.h.b16 %v1103
    %v1196 = vunpack.c.l.b16 %v1104
    %v1197 = vunpack.c.h.b16 %v1104
    %v1198 = vunpack.c.l.b16 %v1105
    %v1199 = vunpack.c.h.b16 %v1105
    %v1200 = vunpack.c.l.b16 %v1106
    %v1201 = vunpack.c.h.b16 %v1106
    %v1202 = vunpack.c.l.b16 %v1107
    %v1203 = vunpack.c.h.b16 %v1107
    %v1204 = vunpack.c.l.b16 %v1108
    %v1205 = vunpack.c.h.b16 %v1108
    %v1206 = vunpack.c.l.b16 %v1109
    %v1207 = vunpack.c.h.b16 %v1109
    %v1208 = vunpack.c.l.b16 %v1110
    %v1209 = vunpack.c.h.b16 %v1110
    %v1210 = vunpack.c.l.b16 %v1111
    %v1211 = vunpack.c.h.b16 %v1111
    %v1212 = vunpack.c.l.b16 %v1112
    %v1213 = vunpack.c.h.b16 %v1112
    %v1214 = vunpack.c.l.b16 %v1113
    %v1215 = vunpack.c.h.b16 %v1113
    %v1216 = vpack.c.b16 %v1154, %v1152
    %v1217 = vpack.c.b16 %v1155, %v1153
    %v1218 = vpack.c.b16 %v1158, %v1156
    %v1219 = vpack.c.b16 %v1159, %v1157
    %v1220 = vpack.c.b16 %v1162, %v1160
    %v1221 = vpack.c.b16 %v1163, %v1161
    %v1222 = vpack.c.b16 %v1166, %v1164
    %v1223 = vpack.c.b16 %v1167, %v1165
    %v1224 = vpack.c.b16 %v1170, %v1168
    %v1225 = vpack.c.b16 %v1171, %v1169
    %v1226 = vpack.c.b16 %v1174, %v1172
    %v1227 = vpack.c.b16 %v1175, %v1173
    %v1228 = vpack.c.b16 %v1178, %v1176
    %v1229 = vpack.c.b16 %v1179, %v1177
    %v1230 = vpack.c.b16 %v1182, %v1180
    %v1231 = vpack.c.b16 %v1183, %v1181
    %v1232 = vpack.c.b16 %v1186, %v1184
    %v1233 = vpack.c.b16 %v1187, %v1185
    %v1234 = vpack.c.b16 %v1190, %v1188
    %v1235 = vpack.c.b16 %v1191, %v1189
    %v1236 = vpack.c.b16 %v1194, %v1192
    %v1237 = vpack.c.b16 %v1195, %v1193
    %v1238 = vpack.c.b16 %v1198, %v1196
    %v1239 = vpack.c.b16 %v1199, %v1197
    %v1240 = vpack.c.b16 %v1202, %v1200
    %v1241 = vpack.c.b16 %v1203, %v1201
    %v1242 = vpack.c.b16 %v1206, %v1204
    %v1243 = vpack.c.b16 %v1207, %v1205
    %v1244 = vpack.c.b16 %v1210, %v1208
    %v1245 = vpack.c.b16 %v1211, %v1209
    %v1246 = vpack.c.b16 %v1214, %v1212
    %v1247 = vpack.c.b16 %v1215, %v1213
    %1280 = vmatpush.bf16.msra.mxu0 %v1230
    %1281 = vmatpush.bf16.msra.mxu0 %v1228
    %1282 = vmatpush.bf16.msra.mxu0 %v1226
    %1283 = vmatpush.bf16.msra.mxu0 %v1224
    %1284 = vmatpush.bf16.msra.mxu0 %v1222
    %1285 = vmatpush.bf16.msra.mxu0 %v1220
    %1286 = vmatpush.bf16.msra.mxu0 %v1218
    %1287 = vmatpush.bf16.msra.mxu0 %v1216
    %1288 = vmatmul.bf16.gmra.mxu0 %v1080
    %v1289 = vpop.f32.mrf.mxu0
    %v1290 = vadd.f32 %v1116, %v1289
    %v1291 = vpop.f32.mrf.mxu0
    %1292 = vdwg.mxu0
    %1293 = vmatpush.bf16.msra.mxu0 %v1246
    %1294 = vmatpush.bf16.msra.mxu0 %v1244
    %1295 = vmatpush.bf16.msra.mxu0 %v1242
    %1296 = vmatpush.bf16.msra.mxu0 %v1240
    %1297 = vmatpush.bf16.msra.mxu0 %v1238
    %1298 = vmatpush.bf16.msra.mxu0 %v1236
    %1299 = vmatpush.bf16.msra.mxu0 %v1234
    %1300 = vmatpush.bf16.msra.mxu0 %v1232
    %1301 = vmatmul.bf16.gmra.mxu0 %v1081
    %v1302 = vpop.f32.mrf.mxu0
    %v1303 = vadd.f32 %v1290, %v1302
    %v1304 = vpop.f32.mrf.mxu0
    %1305 = vdwg.mxu0
    %1306 = vmatpush.bf16.msra.mxu0 %v1231
    %1307 = vmatpush.bf16.msra.mxu0 %v1229
    %1308 = vmatpush.bf16.msra.mxu0 %v1227
    %1309 = vmatpush.bf16.msra.mxu0 %v1225
    %1310 = vmatpush.bf16.msra.mxu0 %v1223
    %1311 = vmatpush.bf16.msra.mxu0 %v1221
    %1312 = vmatpush.bf16.msra.mxu0 %v1219
    %1313 = vmatpush.bf16.msra.mxu0 %v1217
    %1314 = vmatmul.bf16.gmra.mxu0 %v1080
    %v1315 = vpop.f32.mrf.mxu0
    %v1316 = vadd.f32 %v1117, %v1315
    %v1317 = vpop.f32.mrf.mxu0
    %1318 = vdwg.mxu0
    %1319 = vmatpush.bf16.msra.mxu0 %v1247
    %1320 = vmatpush.bf16.msra.mxu0 %v1245
    %1321 = vmatpush.bf16.msra.mxu0 %v1243
    %1322 = vmatpush.bf16.msra.mxu0 %v1241
    %1323 = vmatpush.bf16.msra.mxu0 %v1239
    %1324 = vmatpush.bf16.msra.mxu0 %v1237
    %1325 = vmatpush.bf16.msra.mxu0 %v1235
    %1326 = vmatpush.bf16.msra.mxu0 %v1233
    %1327 = vmatmul.bf16.gmra.mxu0 %v1081
    %v1328 = vpop.f32.mrf.mxu0
    %v1329 = vadd.f32 %v1316, %v1328
    %v1330 = vpop.f32.mrf.mxu0
    %1331 = vdwg.mxu0
    %1332 = vst [vmem:[#allocation10] sm:$0xff] %v1303
    %1333 = vst [vmem:[#allocation10 + $0x8] sm:$0xff] %v1329
    // Predicated region
    $region38: #{tpu_custom_call.1} parent=1 // pred_check
      _
    $region39: #{tpu_custom_call.1} parent=1 // pred_check_branch
      %1335 = sbr.rel (0) target = $region41
    $region40: #{tpu_custom_call.1} parent=1 // pred_region
      %1337 = vsyncadd [#allocation4], 0
      %s1339 = sshll.u32 [#allocation10], 4
      %s1340 = int_to_ptr.vmem [resolvable:$true] %s1339
      %s1341 = sshll.u32 %s5, 4
      %s1342 = int_to_ptr.hbm [resolvable:$true] %s1341
      %1344 = dma.vmem_to_hbm [thread:$0]  %s1340, 256, %s1342, [#allocation4]
    $region41: #{tpu_custom_call.1} parent=1 // pred_fallthru
      _
    // Predicated region
    $region42: #{tpu_custom_call.1} parent=1 // pred_check
      _
    $region43: #{tpu_custom_call.1} parent=1 // pred_check_branch
      %1346 = sbr.rel (0) target = $region45
    $region44: #{tpu_custom_call.1} parent=1 // pred_region
      %1348 = dma.done [#allocation4], 256
    $region45: #{tpu_custom_call.1} parent=1 // pred_fallthru
      _
    %1349 = vsyncpa [#allocation3], 1
    %1350 = vsyncpa [#allocation6], 1
    %1351 = vsyncpa [#allocation9], 1
    %1352 = vsyncpa [#allocation4], 1

</llo_original>
